<compile_context>
chip_gen: v6e
topology: v6e:2x2x1
jax: 0.10.0
libtpu: 0.0.40
codegen_flags: <defaults>
</compile_context>

<pallas_src>
import jax
import jax.numpy as jnp
from jax.experimental import pallas as pl
from jax.experimental.pallas import tpu as pltpu


def _detection_linear_kernel(x_ref, w_ref, b_ref, o_ref):
    # x_ref: [TB, D] VMEM; w_ref: [1, D] VMEM; b_ref: [1] SMEM; o_ref: [TB, 1] VMEM.
    x = x_ref[...]                                  # [TB, D]
    w = w_ref[...]                                  # [1, D] broadcast over sublanes
    s = jnp.sum(x * w, axis=-1, keepdims=True)      # VPU mul fused into XLU lane reduce -> [TB, 1]
    o_ref[...] = (s + b_ref[0]).astype(o_ref.dtype)  # natural [TB, 1] layout, no relayout


def detection_module_forward(x, weight, bias, *, block_batch=None,
                             vmem_budget_bytes=16 * 1024 * 1024):
    """predictions = x @ weight.T + bias  (PyTorch nn.Linear(out_dim, 1) semantics).

    Args:
      x:      [batch, out_dim] float32 — encoder attended_old_nl_final_state.
      weight: [1, out_dim]     float32 — nn.Linear weight (PyTorch layout, untouched).
      bias:   [1]              float32 — nn.Linear bias.
    Returns:
      predictions: [batch, 1] float32.
    """
    batch, out_dim = x.shape
    itemsize = jnp.dtype(x.dtype).itemsize

    if block_batch is None:
        # Size the batch tile so one input block is ~vmem_budget_bytes
        # (double-buffered -> ~2x that), amortizing the ~0.35 us per-step cost.
        rows = max(8, vmem_budget_bytes // max(1, out_dim * itemsize))
        block_batch = max(8, min(8192, (rows // 8) * 8))

    if batch <= block_batch:
        # Single full-array block: block == full dims is always legal wrt (8,128).
        tb = batch
        grid = (1,)
    else:
        # tb is a multiple of 8; Pallas masks the ragged tail block, so a
        # non-divisible batch never stages the whole array in VMEM.
        tb = block_batch
        grid = (pl.cdiv(batch, tb),)

    # Double-buffered input blocks + output blocks + weight + headroom,
    # clamped to [32 MiB, 64 MiB] (64 MiB = v7x physical VMEM per TC).
    tile_bytes = tb * out_dim * itemsize
    vmem_needed = 2 * tile_bytes + 2 * tb * 4 + 2 * out_dim * 4 + (1 << 20)
    vmem_limit = int(min(64 * 1024 * 1024, max(32 * 1024 * 1024, vmem_needed)))

    out = pl.pallas_call(
        _detection_linear_kernel,
        out_shape=jax.ShapeDtypeStruct((batch, 1), jnp.float32),
        grid=grid,
        in_specs=[
            pl.BlockSpec((tb, out_dim), lambda i: (i, 0)),   # batch tile of x
            pl.BlockSpec((1, out_dim), lambda i: (0, 0)),    # weight, reused every step
            pl.BlockSpec(memory_space=pltpu.SMEM),           # bias scalar
        ],
        out_specs=pl.BlockSpec((tb, 1), lambda i: (i, 0)),   # natural [tb, 1] output
        compiler_params=pltpu.CompilerParams(
            dimension_semantics=("parallel",),               # shard tiles across TCs (v7x)
            vmem_limit_bytes=vmem_limit,
        ),
        cost_estimate=pl.CostEstimate(
            flops=2 * batch * out_dim,
            transcendentals=0,
            bytes_accessed=4 * (batch * out_dim + out_dim + 1 + batch),
        ),
    )(x, weight, bias)

    return out


def _reference_forward(x, weight, bias):
    return x @ weight.T + bias


if __name__ == "__main__":
    key = jax.random.PRNGKey(0)
    k_x, k_w, k_b = jax.random.split(key, 3)

    batch = 8       # batch of examples
    out_dim = 32    # manager.out_dim (encoder hidden size)

    # Deterministic synthetic encoder output and Linear(out_dim, 1) params.
    x = jax.random.normal(k_x, (batch, out_dim), dtype=jnp.float32)
    bound = 1.0 / (out_dim ** 0.5)
    weight = jax.random.uniform(
        k_w, (1, out_dim), dtype=jnp.float32, minval=-bound, maxval=bound
    )
    bias = jax.random.uniform(
        k_b, (1,), dtype=jnp.float32, minval=-bound, maxval=bound
    )

    predictions = detection_module_forward(x, weight, bias)
    predictions = jax.block_until_ready(predictions)

    # Sanity check against plain-JAX reference (nn.Linear semantics).
    ref = _reference_forward(x, weight, bias)
    assert predictions.shape == (batch, 1)
    assert jnp.allclose(predictions, ref, atol=1e-5, rtol=1e-5)

    print("KERNEL_OK")
</pallas_src>

<mosaic_0001>
module attributes {stable_mosaic.version = 11 : i64} {
  func.func @_detection_linear_kernel(%arg0: i32, %arg1: memref<8x32xf32, #tpu.memory_space<vmem>>, %arg2: memref<1x32xf32, #tpu.memory_space<vmem>>, %arg3: memref<1xf32, #tpu.memory_space<smem>>, %arg4: memref<8x1xf32, #tpu.memory_space<vmem>>) attributes {dimension_semantics = [#tpu.dimension_semantics<parallel>], iteration_bounds = array<i64: 1>, scalar_prefetch = 0 : i64, scratch_operands = 0 : i64, tpu.core_type = #tpu.core_type<tc>, window_params = [{transform_indices = @transform_0, window_bounds = array<i64: 8, 32>}, {pipeline_mode = #tpu.pipeline_mode<synchronous>, transform_indices = @transform_1, window_bounds = array<i64: 1, 32>}, {transform_indices = @transform_2, window_bounds = array<i64: 1>}, {transform_indices = @transform_3, window_bounds = array<i64: 8, 1>}]} {
    %c0 = arith.constant 0 : index
    %c0_0 = arith.constant 0 : index
    %0 = vector.load %arg1[%c0, %c0_0] : memref<8x32xf32, #tpu.memory_space<vmem>>, vector<8x32xf32>
    %c0_1 = arith.constant 0 : index
    %c0_2 = arith.constant 0 : index
    %1 = vector.load %arg2[%c0_1, %c0_2] : memref<1x32xf32, #tpu.memory_space<vmem>>, vector<1x32xf32>
    %2 = vector.broadcast %1 : vector<1x32xf32> to vector<8x32xf32>
    %3 = arith.mulf %0, %2 : vector<8x32xf32>
    %cst = arith.constant dense<0.000000e+00> : vector<8xf32>
    %4 = vector.multi_reduction <add>, %3, %cst [1] : vector<8x32xf32> to vector<8xf32>
    %5 = vector.shape_cast %4 : vector<8xf32> to vector<8x1xf32>
    %c0_3 = arith.constant 0 : index
    %6 = memref.load %arg3[%c0_3] : memref<1xf32, #tpu.memory_space<smem>>
    %7 = vector.broadcast %6 : f32 to vector<8x1xf32>
    %8 = arith.addf %5, %7 : vector<8x1xf32>
    %c0_4 = arith.constant 0 : index
    %c0_5 = arith.constant 0 : index
    %9 = vector.load %arg4[%c0_4, %c0_5] : memref<8x1xf32, #tpu.memory_space<vmem>>, vector<8x1xf32>
    tpu.vector_store %arg4[%c0_4, %c0_5], %8 {strides = array<i32>} : memref<8x1xf32, #tpu.memory_space<vmem>>, vector<8x1xf32>,
    return
  }
  func.func @transform_0(%arg0: i32) -> (i32, i32) {
    %c0_i32 = arith.constant 0 : i32
    %c0_i32_0 = arith.constant 0 : i32
    return %arg0, %c0_i32 : i32, i32
  }
  func.func @transform_1(%arg0: i32) -> (i32, i32) {
    %c0_i32 = arith.constant 0 : i32
    %c0_i32_0 = arith.constant 0 : i32
    %c0_i32_1 = arith.constant 0 : i32
    return %c0_i32, %c0_i32_0 : i32, i32
  }
  func.func @transform_2(%arg0: i32) -> i32 {
    %c0_i32 = arith.constant 0 : i32
    %c0_i32_0 = arith.constant 0 : i32
    return %c0_i32 : i32
  }
  func.func @transform_3(%arg0: i32) -> (i32, i32) {
    %c0_i32 = arith.constant 0 : i32
    %c0_i32_0 = arith.constant 0 : i32
    return %arg0, %c0_i32 : i32, i32
  }
}

</mosaic_0001>

<llo_original>
// kernel: tpu_custom_call.1
$region0: #{tpu_custom_call.1}
  #allocation0 [shape = 'u32[]', space=smem, size = 0x4, offset = 0x4, fixed_abs, tag = 'smem constant byte address 0x4 - core index']
  #allocation1 [shape = 'u32[144,128]{1,0:T(1,128)}', space=vmem, size = 0x12000, scoped, tag = 'internal scratch']
  #allocation2 [shape = 'f32[1]{0:T(128)S(6)}', space=smem, size = 0x200, scoped, tag = 'scoped memory for tpu_custom_call.1']
  %s0 = inlined_call_operand.hbm [shape: f32[8,32], index: 0, kind: input, shape index: {}]
  %s1 = inlined_call_operand.vmem [shape: f32[1,32], index: 1, kind: input, shape index: {}]
  %s2 = inlined_call_operand.<no memory space> [shape: f32[1], index: 2, kind: input, shape index: {}]
  %s3 = inlined_call_operand.vmem [shape: f32[8,1], index: 3, kind: output, shape index: {}]
  %s4 = sld [smem:[#allocation0]]
  $region26: #{tpu_custom_call.1} parent=0
    _
  %s6 = ssub.s32 1, %s4
  %s7 = scalar_select 0, %s6, %s4
  %8 = sst [smem:[#allocation2]] %s2
  $region1: #{tpu_custom_call.1} parent=0
    #allocation3 [shape = 'u8[4096]{0}', space=vmem, size = 0x1000, scoped, tag = 'input window, operand 0, single buffered']
    #allocation4 [shape = 's32[1]{0}', space=sflag, size = 0x4, scoped, tag = 'scoped memory for tpu_custom_call.1']
    %9 = vsyncpa [#allocation4], 0
    // Predicated region
    $region2: #{tpu_custom_call.1} parent=1 // pred_check
      _
    $region3: #{tpu_custom_call.1} parent=1 // pred_check_branch
      %11 = sbr.rel (0) target = $region5
    $region4: #{tpu_custom_call.1} parent=1 // pred_region
      %s13 = ssub.s32 128, 128
      %14 = vsyncadd [#allocation4], %s13
      %s16 = sshll.u32 [#allocation3], 4
      %s17 = int_to_ptr.vmem [resolvable:$true] %s16
      %19 = dma.hbm_to_vmem [thread:$0]  %s0, 128, %s17, [#allocation4]
    $region5: #{tpu_custom_call.1} parent=1 // pred_fallthru
      _
    // Predicated region
    $region6: #{tpu_custom_call.1} parent=1 // pred_check
      _
    $region7: #{tpu_custom_call.1} parent=1 // pred_check_branch
      %21 = sbr.rel (0) target = $region9
    $region8: #{tpu_custom_call.1} parent=1 // pred_region
      _
    $region9: #{tpu_custom_call.1} parent=1 // pred_fallthru
      _
    // Predicated region
    $region10: #{tpu_custom_call.1} parent=1 // pred_check
      _
    $region11: #{tpu_custom_call.1} parent=1 // pred_check_branch
      %23 = sbr.rel (0) target = $region13
    $region12: #{tpu_custom_call.1} parent=1 // pred_region
      _
    $region13: #{tpu_custom_call.1} parent=1 // pred_fallthru
      _
    // Predicated region
    $region14: #{tpu_custom_call.1} parent=1 // pred_check
      _
    $region15: #{tpu_custom_call.1} parent=1 // pred_check_branch
      %25 = sbr.rel (0) target = $region17
    $region16: #{tpu_custom_call.1} parent=1 // pred_region
      %26 = dma.done [#allocation4], 128
    $region17: #{tpu_custom_call.1} parent=1 // pred_fallthru
      _
    %v27 = vld [vmem:[#allocation3] sm:$0xff]
    %v28 = vld [vmem:[%s1] sm:$0x1]
    %v30 = vlaneseq
    %v31 = vshrl.u32 %v30, 7
    %v32 = vsub.s32 0, %v31
    %v33 = vrot.slane %v28, %v32
    %v35 = vmul.f32 %v27, %v33
    %vm36 = vcmask 261120
    %v37 = vsel %vm36, %v35, 0.0
    %38 = vadd.xlane.f32.xlu0 %v37
    %v39 = vpop.xlane.xlu0 %38
    %s40 = sld [smem:[#allocation2]]
    %v41 = vstv %s40
    %v42 = vadd.f32 %v39, %v41
    %vm43 = vcmask 7168
    %44 = vst.msk [vmem:[%s3] sm:$0xff] %vm43, %v42
    // Predicated region
    $region18: #{tpu_custom_call.1} parent=1 // pred_check
      _
    $region19: #{tpu_custom_call.1} parent=1 // pred_check_branch
      %46 = sbr.rel (0) target = $region21
    $region20: #{tpu_custom_call.1} parent=1 // pred_region
      _
    $region21: #{tpu_custom_call.1} parent=1 // pred_fallthru
      _
    // Predicated region
    $region22: #{tpu_custom_call.1} parent=1 // pred_check
      _
    $region23: #{tpu_custom_call.1} parent=1 // pred_check_branch
      %48 = sbr.rel (0) target = $region25
    $region24: #{tpu_custom_call.1} parent=1 // pred_region
      _
    $region25: #{tpu_custom_call.1} parent=1 // pred_fallthru
      _
    %49 = vsyncpa [#allocation4], 1

</llo_original>
